<compile_context>
chip_gen: v7x
topology: tpu7x:2x2x1
jax: 0.10.0
libtpu: 0.0.40
codegen_flags: <defaults>
</compile_context>

<pallas_src>
import functools
import math

import jax
import jax.numpy as jnp
from jax.experimental import pallas as pl
from jax.experimental.pallas import tpu as pltpu


# ----------------------------- Pallas kernel -------------------------------

def _fused_mlp_kernel(x_ref, c_ref, w_ref, b_ref, o_ref, *,
                      in_dim, cond_dim, layer_dims):
    """One grid step: one (bm, .) batch tile through the whole MLP.

    x_ref : (bm, in_dim)
    c_ref : (bm, cond_dim)
    w_ref : (n_layers + 1, P_in, P_out) packed weights, (in, out) layout:
            slot 0 = first-layer x-part, slot 1 = first-layer cond-part,
            slot 1 + i = layer i for i >= 1. Zero-padded outside true dims.
    b_ref : (n_layers, 1, P_out) packed biases (first-layer bias = b0 + by).
    o_ref : (bm, out_dim)
    layer_dims : tuple of (contract_dim, out_dim) per layer (true dims).
    ReLU after every layer except the last.
    """
    n_layers = len(layer_dims)
    n0 = layer_dims[0][1]

    # First layer: merged conditional branch -> two dots + one (pre-summed) bias.
    wx = w_ref[0, :in_dim, :n0]
    wy = w_ref[1, :cond_dim, :n0]
    h = (jnp.dot(x_ref[...], wx, preferred_element_type=jnp.float32)
         + jnp.dot(c_ref[...], wy, preferred_element_type=jnp.float32)
         + b_ref[0, :, :n0])
    if n_layers > 1:
        h = jnp.maximum(h, 0.0)

    # Hidden + output layers; activations never leave VMEM/vregs.
    for li in range(1, n_layers):
        k, n = layer_dims[li]
        w = w_ref[1 + li, :k, :n]
        b = b_ref[li, :, :n]
        h = jnp.dot(h, w, preferred_element_type=jnp.float32) + b
        if li < n_layers - 1:
            h = jnp.maximum(h, 0.0)

    o_ref[...] = h.astype(o_ref.dtype)


# --------------------------- parameter handling -----------------------------

def _kaiming_uniform(key, out_dim, in_dim):
    # matches nn.Linear.reset_parameters / kaiming_uniform_(a=sqrt(5)):
    # bound = 1 / sqrt(fan_in)
    bound = 1.0 / math.sqrt(in_dim)
    return jax.random.uniform(key, (out_dim, in_dim), jnp.float32, -bound, bound)


def init_cond_masked_mlp(key, in_dim, cond_dim, out_dim, h_dim):
    """Deterministic parameter / mask construction (h_dim assumed non-empty).

    Weights follow the PyTorch nn.Linear convention (out_features, in_features).
    """
    in_dims = [in_dim] + h_dim[:-1]
    out_dims = list(h_dim)
    layer_dims = list(zip(out_dims, in_dims)) + [(out_dim, h_dim[-1])]

    params = {"fcs": [], "masks": []}
    for (o, i) in layer_dims:
        key, kw, kb, km = jax.random.split(key, 4)
        w = _kaiming_uniform(kw, o, i)
        bound = 1.0 / math.sqrt(i)
        b = jax.random.uniform(kb, (o,), jnp.float32, -bound, bound)
        # deterministic binary mask (~70% ones)
        m = (jax.random.uniform(km, (o, i)) < 0.7).astype(jnp.float32)
        params["fcs"].append((w, b))
        params["masks"].append(m)

    key, ky = jax.random.split(key)
    wy = _kaiming_uniform(ky, h_dim[0], cond_dim)
    by = jnp.zeros((h_dim[0],), jnp.float32)   # nn.init.constant_(bias, 0.0)
    params["fc_y"] = (wy, by)
    return params


def prepare_cond_masked_mlp(params, in_dim, cond_dim):
    """One-time prep (masks are non-trainable buffers):
      * fold masks into weights,
      * pre-transpose to (in, out),
      * pre-sum first-layer bias (b0 + by),
      * pack all weights into one zero-padded buffer and all biases into one.
    """
    fcs, masks = params["fcs"], params["masks"]
    wy, by = params["fc_y"]

    w0, b0 = fcs[0]
    layer_ws = [(w0 * masks[0]).T]            # (in_dim, h0)
    layer_bs = [b0 + by]
    for i in range(1, len(fcs)):
        wi, bi = fcs[i]
        layer_ws.append((wi * masks[i]).T)    # (prev, out)
        layer_bs.append(bi)

    # weight slots: 0 = x-part of layer 0, 1 = cond-part of layer 0, 1+i = layer i
    slots = [layer_ws[0], wy.T] + layer_ws[1:]
    p_in = max(w.shape[0] for w in slots)
    p_out = max(w.shape[1] for w in slots)
    n_layers = len(layer_ws)

    w_packed = jnp.zeros((len(slots), p_in, p_out), jnp.float32)
    for s, w in enumerate(slots):
        w_packed = w_packed.at[s, :w.shape[0], :w.shape[1]].set(w)

    b_packed = jnp.zeros((n_layers, 1, p_out), jnp.float32)
    for i, b in enumerate(layer_bs):
        b_packed = b_packed.at[i, 0, :b.shape[0]].set(b)

    layer_dims = tuple((w.shape[0], w.shape[1]) for w in layer_ws)
    return {"w": w_packed, "b": b_packed, "layer_dims": layer_dims,
            "in_dim": in_dim, "cond_dim": cond_dim,
            "out_dim": layer_ws[-1].shape[1]}


# -------------------------------- forward -----------------------------------

def cond_masked_mlp_forward(prepared, x, cond_var, *, bm=128):
    """Mirrors CondMaskedMLP.forward (h_dim non-empty path), activation=ReLU.

    Single fused pallas_call; batch-only grid, weights resident across tiles."""
    B = x.shape[0]
    in_dim = prepared["in_dim"]
    cond_dim = prepared["cond_dim"]
    out_dim = prepared["out_dim"]
    layer_dims = prepared["layer_dims"]
    w, b = prepared["w"], prepared["b"]

    bm = min(bm, B)
    assert B % bm == 0, "batch must be divisible by the batch tile"
    grid = (B // bm,)

    kernel = functools.partial(_fused_mlp_kernel, in_dim=in_dim,
                               cond_dim=cond_dim, layer_dims=layer_dims)

    n0 = layer_dims[0][1]
    flops = 2 * B * (in_dim * n0 + cond_dim * n0
                     + sum(k * n for k, n in layer_dims[1:]))
    bytes_accessed = 4 * (x.size + cond_var.size + w.size + b.size + B * out_dim)

    return pl.pallas_call(
        kernel,
        out_shape=jax.ShapeDtypeStruct((B, out_dim), jnp.float32),
        grid=grid,
        in_specs=[
            pl.BlockSpec((bm, in_dim), lambda i: (i, 0)),
            pl.BlockSpec((bm, cond_dim), lambda i: (i, 0)),
            # constant block index -> weights/biases stay VMEM-resident
            pl.BlockSpec(w.shape, lambda i: (0, 0, 0)),
            pl.BlockSpec(b.shape, lambda i: (0, 0, 0)),
        ],
        out_specs=pl.BlockSpec((bm, out_dim), lambda i: (i, 0)),
        compiler_params=pltpu.CompilerParams(
            dimension_semantics=("parallel",)),   # shards batch tiles on v7x
        cost_estimate=pl.CostEstimate(flops=flops, transcendentals=0,
                                      bytes_accessed=bytes_accessed),
    )(x, cond_var, w, b)


# ------------------------------- reference ----------------------------------

def cond_masked_mlp_reference(params, x, cond_var):
    fcs, masks = params["fcs"], params["masks"]
    wy, by = params["fc_y"]
    w0, b0 = fcs[0]
    h = x @ (w0 * masks[0]).T + b0 + cond_var @ wy.T + by
    h = jnp.maximum(h, 0.0)
    for i in range(1, len(fcs) - 1):
        wi, bi = fcs[i]
        h = jnp.maximum(h @ (wi * masks[i]).T + bi, 0.0)
    wl, bl = fcs[-1]
    return h @ (wl * masks[-1]).T + bl


# --------------------------------- driver -----------------------------------

if __name__ == "__main__":
    key = jax.random.PRNGKey(0)

    batch = 8
    in_dim = 16
    cond_dim = 4
    out_dim = 16
    h_dim = [32, 32]

    key, kp, kx, kc = jax.random.split(key, 4)
    params = init_cond_masked_mlp(kp, in_dim, cond_dim, out_dim, h_dim)
    prepared = prepare_cond_masked_mlp(params, in_dim, cond_dim)

    # small-batch case (single grid step)
    x = jax.random.normal(kx, (batch, in_dim), jnp.float32)
    cond_var = jax.random.normal(kc, (batch, cond_dim), jnp.float32)
    out = jax.block_until_ready(cond_masked_mlp_forward(prepared, x, cond_var))
    ref = cond_masked_mlp_reference(params, x, cond_var)
    assert out.shape == (batch, out_dim)
    assert jnp.allclose(out, ref, atol=1e-5, rtol=1e-5), "mismatch vs reference (B=8)"

    # larger batch: exercises the multi-tile batch grid with resident weights
    kx2, kc2 = jax.random.split(key, 2)
    big_batch = 256
    x2 = jax.random.normal(kx2, (big_batch, in_dim), jnp.float32)
    c2 = jax.random.normal(kc2, (big_batch, cond_dim), jnp.float32)
    out2 = jax.block_until_ready(
        cond_masked_mlp_forward(prepared, x2, c2, bm=128))
    ref2 = cond_masked_mlp_reference(params, x2, c2)
    assert out2.shape == (big_batch, out_dim)
    assert jnp.allclose(out2, ref2, atol=1e-5, rtol=1e-5), "mismatch vs reference (B=256)"

    # TODO(synk): bf16 weight/activation cast for the MXU (keep f32 accumulator,
    # bias add and ReLU) when h_dim / batch scale up.
    print("KERNEL_OK")
</pallas_src>

<mosaic_0001>
module attributes {stable_mosaic.version = 11 : i64} {
  func.func @_fused_mlp_kernel(%arg0: i32, %arg1: memref<8x16xf32, #tpu.memory_space<vmem>>, %arg2: memref<8x4xf32, #tpu.memory_space<vmem>>, %arg3: memref<4x32x32xf32, #tpu.memory_space<vmem>>, %arg4: memref<3x1x32xf32, #tpu.memory_space<vmem>>, %arg5: memref<8x16xf32, #tpu.memory_space<vmem>>) attributes {dimension_semantics = [#tpu.dimension_semantics<parallel>], iteration_bounds = array<i64: 1>, scalar_prefetch = 0 : i64, scratch_operands = 0 : i64, tpu.core_type = #tpu.core_type<tc>, window_params = [{transform_indices = @transform_0, window_bounds = array<i64: 8, 16>}, {transform_indices = @transform_1, window_bounds = array<i64: 8, 4>}, {pipeline_mode = #tpu.pipeline_mode<synchronous>, transform_indices = @transform_2, window_bounds = array<i64: 4, 32, 32>}, {pipeline_mode = #tpu.pipeline_mode<synchronous>, transform_indices = @transform_3, window_bounds = array<i64: 3, 1, 32>}, {transform_indices = @transform_4, window_bounds = array<i64: 8, 16>}]} {
    %c0 = arith.constant 0 : index
    %c0_0 = arith.constant 0 : index
    %c0_1 = arith.constant 0 : index
    %0 = vector.load %arg3[%c0, %c0_0, %c0_1] : memref<4x32x32xf32, #tpu.memory_space<vmem>>, vector<1x16x32xf32>
    %1 = vector.shape_cast %0 : vector<1x16x32xf32> to vector<16x32xf32>
    %c1 = arith.constant 1 : index
    %c0_2 = arith.constant 0 : index
    %c0_3 = arith.constant 0 : index
    %2 = vector.load %arg3[%c1, %c0_2, %c0_3] : memref<4x32x32xf32, #tpu.memory_space<vmem>>, vector<1x4x32xf32>
    %3 = vector.shape_cast %2 : vector<1x4x32xf32> to vector<4x32xf32>
    %c0_4 = arith.constant 0 : index
    %c0_5 = arith.constant 0 : index
    %4 = vector.load %arg1[%c0_4, %c0_5] : memref<8x16xf32, #tpu.memory_space<vmem>>, vector<8x16xf32>
    %cst = arith.constant dense<0.000000e+00> : vector<8x32xf32>
    %5 = tpu.matmul %4, %1, %cst {dimension_numbers = #tpu.dot_dimension_numbers<[1], [0], [0], [1], [0, 0, 1, 1], [], []>} : vector<8x16xf32>, vector<16x32xf32>, vector<8x32xf32> -> vector<8x32xf32>
    %c0_6 = arith.constant 0 : index
    %c0_7 = arith.constant 0 : index
    %6 = vector.load %arg2[%c0_6, %c0_7] : memref<8x4xf32, #tpu.memory_space<vmem>>, vector<8x4xf32>
    %cst_8 = arith.constant dense<0.000000e+00> : vector<8x32xf32>
    %7 = tpu.matmul %6, %3, %cst_8 {dimension_numbers = #tpu.dot_dimension_numbers<[1], [0], [0], [1], [0, 0, 1, 1], [], []>} : vector<8x4xf32>, vector<4x32xf32>, vector<8x32xf32> -> vector<8x32xf32>
    %8 = arith.addf %5, %7 : vector<8x32xf32>
    %c0_9 = arith.constant 0 : index
    %c0_10 = arith.constant 0 : index
    %c0_11 = arith.constant 0 : index
    %9 = vector.load %arg4[%c0_9, %c0_10, %c0_11] : memref<3x1x32xf32, #tpu.memory_space<vmem>>, vector<1x1x32xf32>
    %10 = vector.shape_cast %9 : vector<1x1x32xf32> to vector<1x32xf32>
    %11 = vector.broadcast %10 : vector<1x32xf32> to vector<8x32xf32>
    %12 = arith.addf %8, %11 : vector<8x32xf32>
    %cst_12 = arith.constant 0.000000e+00 : f32
    %13 = vector.broadcast %cst_12 : f32 to vector<8x32xf32>
    %14 = arith.maximumf %12, %13 : vector<8x32xf32>
    %c2 = arith.constant 2 : index
    %c0_13 = arith.constant 0 : index
    %c0_14 = arith.constant 0 : index
    %15 = vector.load %arg3[%c2, %c0_13, %c0_14] : memref<4x32x32xf32, #tpu.memory_space<vmem>>, vector<1x32x32xf32>
    %16 = vector.shape_cast %15 : vector<1x32x32xf32> to vector<32x32xf32>
    %c1_15 = arith.constant 1 : index
    %c0_16 = arith.constant 0 : index
    %c0_17 = arith.constant 0 : index
    %17 = vector.load %arg4[%c1_15, %c0_16, %c0_17] : memref<3x1x32xf32, #tpu.memory_space<vmem>>, vector<1x1x32xf32>
    %18 = vector.shape_cast %17 : vector<1x1x32xf32> to vector<1x32xf32>
    %cst_18 = arith.constant dense<0.000000e+00> : vector<8x32xf32>
    %19 = tpu.matmul %14, %16, %cst_18 {dimension_numbers = #tpu.dot_dimension_numbers<[1], [0], [0], [1], [0, 0, 1, 1], [], []>} : vector<8x32xf32>, vector<32x32xf32>, vector<8x32xf32> -> vector<8x32xf32>
    %20 = vector.broadcast %18 : vector<1x32xf32> to vector<8x32xf32>
    %21 = arith.addf %19, %20 : vector<8x32xf32>
    %cst_19 = arith.constant 0.000000e+00 : f32
    %22 = vector.broadcast %cst_19 : f32 to vector<8x32xf32>
    %23 = arith.maximumf %21, %22 : vector<8x32xf32>
    %c3 = arith.constant 3 : index
    %c0_20 = arith.constant 0 : index
    %c0_21 = arith.constant 0 : index
    %24 = vector.load %arg3[%c3, %c0_20, %c0_21] : memref<4x32x32xf32, #tpu.memory_space<vmem>>, vector<1x32x16xf32>
    %25 = vector.shape_cast %24 : vector<1x32x16xf32> to vector<32x16xf32>
    %c2_22 = arith.constant 2 : index
    %c0_23 = arith.constant 0 : index
    %c0_24 = arith.constant 0 : index
    %26 = vector.load %arg4[%c2_22, %c0_23, %c0_24] : memref<3x1x32xf32, #tpu.memory_space<vmem>>, vector<1x1x16xf32>
    %27 = vector.shape_cast %26 : vector<1x1x16xf32> to vector<1x16xf32>
    %cst_25 = arith.constant dense<0.000000e+00> : vector<8x16xf32>
    %28 = tpu.matmul %23, %25, %cst_25 {dimension_numbers = #tpu.dot_dimension_numbers<[1], [0], [0], [1], [0, 0, 1, 1], [], []>} : vector<8x32xf32>, vector<32x16xf32>, vector<8x16xf32> -> vector<8x16xf32>
    %29 = vector.broadcast %27 : vector<1x16xf32> to vector<8x16xf32>
    %30 = arith.addf %28, %29 : vector<8x16xf32>
    %c0_26 = arith.constant 0 : index
    %c0_27 = arith.constant 0 : index
    %31 = vector.load %arg5[%c0_26, %c0_27] : memref<8x16xf32, #tpu.memory_space<vmem>>, vector<8x16xf32>
    tpu.vector_store %arg5[%c0_26, %c0_27], %30 {strides = array<i32>} : memref<8x16xf32, #tpu.memory_space<vmem>>, vector<8x16xf32>,
    return
  }
  func.func @transform_0(%arg0: i32) -> (i32, i32) {
    %c0_i32 = arith.constant 0 : i32
    %c0_i32_0 = arith.constant 0 : i32
    return %arg0, %c0_i32 : i32, i32
  }
  func.func @transform_1(%arg0: i32) -> (i32, i32) {
    %c0_i32 = arith.constant 0 : i32
    %c0_i32_0 = arith.constant 0 : i32
    return %arg0, %c0_i32 : i32, i32
  }
  func.func @transform_2(%arg0: i32) -> (i32, i32, i32) {
    %c0_i32 = arith.constant 0 : i32
    %c0_i32_0 = arith.constant 0 : i32
    %c0_i32_1 = arith.constant 0 : i32
    %c0_i32_2 = arith.constant 0 : i32
    return %c0_i32, %c0_i32_0, %c0_i32_1 : i32, i32, i32
  }
  func.func @transform_3(%arg0: i32) -> (i32, i32, i32) {
    %c0_i32 = arith.constant 0 : i32
    %c0_i32_0 = arith.constant 0 : i32
    %c0_i32_1 = arith.constant 0 : i32
    %c0_i32_2 = arith.constant 0 : i32
    return %c0_i32, %c0_i32_0, %c0_i32_1 : i32, i32, i32
  }
  func.func @transform_4(%arg0: i32) -> (i32, i32) {
    %c0_i32 = arith.constant 0 : i32
    %c0_i32_0 = arith.constant 0 : i32
    return %arg0, %c0_i32 : i32, i32
  }
}

</mosaic_0001>

<llo_original>
// kernel: tpu_custom_call.1
$region0: #{tpu_custom_call.1}
  #allocation0 [shape = 'u32[]', space=smem, size = 0x4, offset = 0x4, fixed_abs, tag = 'smem constant byte address 0x4 - core index']
  #allocation1 [shape = 'u32[144,128]{1,0:T(1,128)}', space=vmem, size = 0x12000, scoped, tag = 'internal scratch']
  %s0 = inlined_call_operand.vmem [shape: f32[8,16], index: 0, kind: input, shape index: {}]
  %s1 = inlined_call_operand.vmem [shape: f32[8,4], index: 1, kind: input, shape index: {}]
  %s2 = inlined_call_operand.hbm [shape: f32[4,32,32], index: 2, kind: input, shape index: {}]
  %s3 = inlined_call_operand.vmem [shape: f32[3,1,32], index: 3, kind: input, shape index: {}]
  %s4 = inlined_call_operand.hbm [shape: f32[8,16], index: 4, kind: output, shape index: {}]
  %s5 = sld [smem:[#allocation0]]
  $region30: #{tpu_custom_call.1} parent=0
    _
  %s7 = ssub.s32 1, %s5
  %s8 = scalar_select 0, %s7, %s5
  $region1: #{tpu_custom_call.1} parent=0
    #allocation2 [shape = 'u8[65536]{0}', space=vmem, size = 0x10000, scoped, tag = 'input window, operand 2, single buffered']
    #allocation3 [shape = 's32[1]{0}', space=sflag, size = 0x4, scoped, tag = 'scoped memory for tpu_custom_call.1']
    #allocation4 [shape = 's32[1]{0}', space=sflag, size = 0x4, scoped, tag = 'scoped memory for tpu_custom_call.1']
    #allocation5 [shape = 'u8[4096]{0}', space=vmem, size = 0x1000, scoped, tag = 'output window, operand 0, single buffered']
    %9 = vsyncpa [#allocation3], 0
    %10 = vsyncpa [#allocation4], 0
    // Predicated region
    $region2: #{tpu_custom_call.1} parent=1 // pred_check
      _
    $region3: #{tpu_custom_call.1} parent=1 // pred_check_branch
      %12 = sbr.rel (0) target = $region5
    $region4: #{tpu_custom_call.1} parent=1 // pred_region
      _
    $region5: #{tpu_custom_call.1} parent=1 // pred_fallthru
      _
    // Predicated region
    $region6: #{tpu_custom_call.1} parent=1 // pred_check
      _
    $region7: #{tpu_custom_call.1} parent=1 // pred_check_branch
      %14 = sbr.rel (0) target = $region9
    $region8: #{tpu_custom_call.1} parent=1 // pred_region
      _
    $region9: #{tpu_custom_call.1} parent=1 // pred_fallthru
      _
    // Predicated region
    $region10: #{tpu_custom_call.1} parent=1 // pred_check
      _
    $region11: #{tpu_custom_call.1} parent=1 // pred_check_branch
      %16 = sbr.rel (0) target = $region13
    $region12: #{tpu_custom_call.1} parent=1 // pred_region
      %s18 = ssub.s32 2048, 2048
      %19 = vsyncadd [#allocation3], %s18
      %s20 = sshll.u32 [#allocation2], 4
      %s21 = int_to_ptr.vmem [resolvable:$true] %s20
      %26 = dma.hbm_to_vmem [thread:$0]  %s2, 2048, %s21, [#allocation3], 128, 128, 8
    $region13: #{tpu_custom_call.1} parent=1 // pred_fallthru
      _
    // Predicated region
    $region14: #{tpu_custom_call.1} parent=1 // pred_check
      _
    $region15: #{tpu_custom_call.1} parent=1 // pred_check_branch
      %28 = sbr.rel (0) target = $region17
    $region16: #{tpu_custom_call.1} parent=1 // pred_region
      _
    $region17: #{tpu_custom_call.1} parent=1 // pred_fallthru
      _
    // Predicated region
    $region18: #{tpu_custom_call.1} parent=1 // pred_check
      _
    $region19: #{tpu_custom_call.1} parent=1 // pred_check_branch
      %30 = sbr.rel (0) target = $region21
    $region20: #{tpu_custom_call.1} parent=1 // pred_region
      %31 = dma.done [#allocation3], 2048
    $region21: #{tpu_custom_call.1} parent=1 // pred_fallthru
      _
    %v32 = vld [vmem:[#allocation2] sm:$0xff]
    %v33 = vld [vmem:[#allocation2 + $0x8] sm:$0xff]
    %s34 = scalar_lea.vmem [#allocation2], 32
    %v35 = vld [vmem:[%s34] sm:$0xf]
    %v36 = vld [vmem:[%s0] sm:$0xff]
    %v37 = vld [vmem:[%s1] sm:$0xff]
    %vm38 = vcmask 31744
    %v40 = vsel %vm38, %v37, 0
    %vm42 = vcmask 1043456
    %v44 = vsel %vm42, %v35, 0
    %46 = vmatprep.subr.mxu0 0.0
    %47 = vmatpush1.msra.mxu0 %v44
    %48 = vmatprep.subr.mxu0 0.0
    %49 = vmatpush1.msra.mxu0 0.0
    %50 = vmatprep.subr.mxu0 0.0
    %51 = vmatpush1.msra.mxu0 0.0
    %52 = vmatprep.subr.mxu0 0.0
    %53 = vmatpush1.msra.mxu0 0.0
    %54 = vmatprep.subr.mxu0 0.0
    %55 = vmatpush1.msra.mxu0 0.0
    %56 = vmatprep.subr.mxu0 0.0
    %57 = vmatpush1.msra.mxu0 0.0
    %58 = vmatprep.subr.mxu0 0.0
    %59 = vmatpush1.msra.mxu0 0.0
    %60 = vmatprep.subr.mxu0 0.0
    %61 = vmatpush1.msra.mxu0 0.0
    %62 = vmatprep.subr.mxu0 0.0
    %63 = vmatpush1.msra.mxu0 0.0
    %64 = vmatprep.subr.mxu0 0.0
    %65 = vmatpush1.msra.mxu0 0.0
    %66 = vmatprep.subr.mxu0 0.0
    %67 = vmatpush1.msra.mxu0 0.0
    %68 = vmatprep.subr.mxu0 0.0
    %69 = vmatpush1.msra.mxu0 0.0
    %70 = vmatprep.subr.mxu0 0.0
    %71 = vmatpush1.msra.mxu0 0.0
    %72 = vmatprep.subr.mxu0 0.0
    %73 = vmatpush1.msra.mxu0 0.0
    %74 = vmatprep.subr.mxu0 0.0
    %75 = vmatpush1.msra.mxu0 0.0
    %76 = vmatprep.subr.mxu0 0.0
    %77 = vmatpush1.msra.mxu0 0.0
    %78 = vmatprep.subr.mxu0 0.0
    %79 = vmatpush1.msra.mxu0 0.0
    %80 = vmatprep.subr.mxu0 0.0
    %81 = vmatpush1.msra.mxu0 0.0
    %82 = vmatprep.subr.mxu0 0.0
    %83 = vmatpush1.msra.mxu0 0.0
    %84 = vmatprep.subr.mxu0 0.0
    %85 = vmatpush1.msra.mxu0 0.0
    %86 = vmatprep.subr.mxu0 0.0
    %87 = vmatpush1.msra.mxu0 0.0
    %88 = vmatprep.subr.mxu0 0.0
    %89 = vmatpush1.msra.mxu0 0.0
    %90 = vmatprep.subr.mxu0 0.0
    %91 = vmatpush1.msra.mxu0 0.0
    %92 = vmatprep.subr.mxu0 0.0
    %93 = vmatpush1.msra.mxu0 0.0
    %94 = vmatprep.subr.mxu0 0.0
    %95 = vmatpush1.msra.mxu0 0.0
    %96 = vmatprep.subr.mxu0 0.0
    %97 = vmatpush1.msra.mxu0 0.0
    %98 = vmatprep.subr.mxu0 0.0
    %99 = vmatpush1.msra.mxu0 0.0
    %100 = vmatprep.subr.mxu0 0.0
    %101 = vmatpush1.msra.mxu0 0.0
    %102 = vmatprep.subr.mxu0 0.0
    %103 = vmatpush1.msra.mxu0 0.0
    %104 = vmatprep.subr.mxu0 0.0
    %105 = vmatpush1.msra.mxu0 0.0
    %106 = vmatprep.subr.mxu0 0.0
    %107 = vmatpush1.msra.mxu0 0.0
    %108 = vmatprep.subr.mxu0 0.0
    %109 = vmatpush1.msra.mxu0 0.0
    %110 = vmatprep.mubr.f32.mxu0 0.0
    %111 = vmatmul.mubr.f32.gmra.mrb[0].mxu0 %v40
    %v112 = vpop.f32.mrb[0].mxu0
    %v113 = vadd.f32 0.0, %v112
    %v114 = vpop.f32.mrb[0].mxu0
    %115 = vdwg.mxu0
    %vm116 = vcmask 130048
    %v118 = vsel %vm116, %v36, 0
    %120 = vmatprep.subr.mxu0 0.0
    %121 = vmatpush1.msra.mxu0 %v32
    %122 = vmatprep.subr.mxu0 0.0
    %123 = vmatpush1.msra.mxu0 %v33
    %124 = vmatprep.subr.mxu0 0.0
    %125 = vmatpush1.msra.mxu0 0.0
    %126 = vmatprep.subr.mxu0 0.0
    %127 = vmatpush1.msra.mxu0 0.0
    %128 = vmatprep.subr.mxu0 0.0
    %129 = vmatpush1.msra.mxu0 0.0
    %130 = vmatprep.subr.mxu0 0.0
    %131 = vmatpush1.msra.mxu0 0.0
    %132 = vmatprep.subr.mxu0 0.0
    %133 = vmatpush1.msra.mxu0 0.0
    %134 = vmatprep.subr.mxu0 0.0
    %135 = vmatpush1.msra.mxu0 0.0
    %136 = vmatprep.subr.mxu0 0.0
    %137 = vmatpush1.msra.mxu0 0.0
    %138 = vmatprep.subr.mxu0 0.0
    %139 = vmatpush1.msra.mxu0 0.0
    %140 = vmatprep.subr.mxu0 0.0
    %141 = vmatpush1.msra.mxu0 0.0
    %142 = vmatprep.subr.mxu0 0.0
    %143 = vmatpush1.msra.mxu0 0.0
    %144 = vmatprep.subr.mxu0 0.0
    %145 = vmatpush1.msra.mxu0 0.0
    %146 = vmatprep.subr.mxu0 0.0
    %147 = vmatpush1.msra.mxu0 0.0
    %148 = vmatprep.subr.mxu0 0.0
    %149 = vmatpush1.msra.mxu0 0.0
    %150 = vmatprep.subr.mxu0 0.0
    %151 = vmatpush1.msra.mxu0 0.0
    %152 = vmatprep.subr.mxu0 0.0
    %153 = vmatpush1.msra.mxu0 0.0
    %154 = vmatprep.subr.mxu0 0.0
    %155 = vmatpush1.msra.mxu0 0.0
    %156 = vmatprep.subr.mxu0 0.0
    %157 = vmatpush1.msra.mxu0 0.0
    %158 = vmatprep.subr.mxu0 0.0
    %159 = vmatpush1.msra.mxu0 0.0
    %160 = vmatprep.subr.mxu0 0.0
    %161 = vmatpush1.msra.mxu0 0.0
    %162 = vmatprep.subr.mxu0 0.0
    %163 = vmatpush1.msra.mxu0 0.0
    %164 = vmatprep.subr.mxu0 0.0
    %165 = vmatpush1.msra.mxu0 0.0
    %166 = vmatprep.subr.mxu0 0.0
    %167 = vmatpush1.msra.mxu0 0.0
    %168 = vmatprep.subr.mxu0 0.0
    %169 = vmatpush1.msra.mxu0 0.0
    %170 = vmatprep.subr.mxu0 0.0
    %171 = vmatpush1.msra.mxu0 0.0
    %172 = vmatprep.subr.mxu0 0.0
    %173 = vmatpush1.msra.mxu0 0.0
    %174 = vmatprep.subr.mxu0 0.0
    %175 = vmatpush1.msra.mxu0 0.0
    %176 = vmatprep.subr.mxu0 0.0
    %177 = vmatpush1.msra.mxu0 0.0
    %178 = vmatprep.subr.mxu0 0.0
    %179 = vmatpush1.msra.mxu0 0.0
    %180 = vmatprep.subr.mxu0 0.0
    %181 = vmatpush1.msra.mxu0 0.0
    %182 = vmatprep.subr.mxu0 0.0
    %183 = vmatpush1.msra.mxu0 0.0
    %184 = vmatprep.mubr.f32.mxu0 0.0
    %185 = vmatmul.mubr.f32.gmra.mrb[0].mxu0 %v118
    %v186 = vpop.f32.mrb[0].mxu0
    %v187 = vadd.f32 %v113, %v186
    %v188 = vpop.f32.mrb[0].mxu0
    %189 = vdwg.mxu0
    %v190 = vld [vmem:[%s3] sm:$0x1]
    %v192 = vlaneseq
    %v193 = vshrl.u32 %v192, 7
    %v194 = vsub.s32 0, %v193
    %v195 = vrot.slane %v190, %v194
    %v197 = vadd.f32 %v187, %v195
    %v198 = vmax.f32 %v197, 0.0
    %s199 = scalar_lea.vmem [#allocation2], 64
    %v200 = vld [vmem:[%s199] sm:$0xff]
    %v201 = vld [vmem:[%s199 + $0x8] sm:$0xff]
    %v202 = vld [vmem:[%s199 + $0x10] sm:$0xff]
    %v203 = vld [vmem:[%s199 + $0x18] sm:$0xff]
    %s204 = scalar_lea.vmem %s3, 1
    %v205 = vld [vmem:[%s204] sm:$0x1]
    %v207 = vlaneseq
    %v208 = vshrl.u32 %v207, 7
    %v209 = vsub.s32 0, %v208
    %v210 = vrot.slane %v205, %v209
    %vm212 = vcmask 261120
    %v214 = vsel %vm212, %v198, 0
    %216 = vmatprep.subr.mxu0 0.0
    %217 = vmatpush1.msra.mxu0 %v200
    %218 = vmatprep.subr.mxu0 0.0
    %219 = vmatpush1.msra.mxu0 %v201
    %220 = vmatprep.subr.mxu0 0.0
    %221 = vmatpush1.msra.mxu0 %v202
    %222 = vmatprep.subr.mxu0 0.0
    %223 = vmatpush1.msra.mxu0 %v203
    %224 = vmatprep.subr.mxu0 0.0
    %225 = vmatpush1.msra.mxu0 0.0
    %226 = vmatprep.subr.mxu0 0.0
    %227 = vmatpush1.msra.mxu0 0.0
    %228 = vmatprep.subr.mxu0 0.0
    %229 = vmatpush1.msra.mxu0 0.0
    %230 = vmatprep.subr.mxu0 0.0
    %231 = vmatpush1.msra.mxu0 0.0
    %232 = vmatprep.subr.mxu0 0.0
    %233 = vmatpush1.msra.mxu0 0.0
    %234 = vmatprep.subr.mxu0 0.0
    %235 = vmatpush1.msra.mxu0 0.0
    %236 = vmatprep.subr.mxu0 0.0
    %237 = vmatpush1.msra.mxu0 0.0
    %238 = vmatprep.subr.mxu0 0.0
    %239 = vmatpush1.msra.mxu0 0.0
    %240 = vmatprep.subr.mxu0 0.0
    %241 = vmatpush1.msra.mxu0 0.0
    %242 = vmatprep.subr.mxu0 0.0
    %243 = vmatpush1.msra.mxu0 0.0
    %244 = vmatprep.subr.mxu0 0.0
    %245 = vmatpush1.msra.mxu0 0.0
    %246 = vmatprep.subr.mxu0 0.0
    %247 = vmatpush1.msra.mxu0 0.0
    %248 = vmatprep.subr.mxu0 0.0
    %249 = vmatpush1.msra.mxu0 0.0
    %250 = vmatprep.subr.mxu0 0.0
    %251 = vmatpush1.msra.mxu0 0.0
    %252 = vmatprep.subr.mxu0 0.0
    %253 = vmatpush1.msra.mxu0 0.0
    %254 = vmatprep.subr.mxu0 0.0
    %255 = vmatpush1.msra.mxu0 0.0
    %256 = vmatprep.subr.mxu0 0.0
    %257 = vmatpush1.msra.mxu0 0.0
    %258 = vmatprep.subr.mxu0 0.0
    %259 = vmatpush1.msra.mxu0 0.0
    %260 = vmatprep.subr.mxu0 0.0
    %261 = vmatpush1.msra.mxu0 0.0
    %262 = vmatprep.subr.mxu0 0.0
    %263 = vmatpush1.msra.mxu0 0.0
    %264 = vmatprep.subr.mxu0 0.0
    %265 = vmatpush1.msra.mxu0 0.0
    %266 = vmatprep.subr.mxu0 0.0
    %267 = vmatpush1.msra.mxu0 0.0
    %268 = vmatprep.subr.mxu0 0.0
    %269 = vmatpush1.msra.mxu0 0.0
    %270 = vmatprep.subr.mxu0 0.0
    %271 = vmatpush1.msra.mxu0 0.0
    %272 = vmatprep.subr.mxu0 0.0
    %273 = vmatpush1.msra.mxu0 0.0
    %274 = vmatprep.subr.mxu0 0.0
    %275 = vmatpush1.msra.mxu0 0.0
    %276 = vmatprep.subr.mxu0 0.0
    %277 = vmatpush1.msra.mxu0 0.0
    %278 = vmatprep.subr.mxu0 0.0
    %279 = vmatpush1.msra.mxu0 0.0
    %280 = vmatprep.mubr.f32.mxu0 0.0
    %281 = vmatmul.mubr.f32.gmra.mrb[0].mxu0 %v214
    %v282 = vpop.f32.mrb[0].mxu0
    %v283 = vadd.f32 %v210, %v282
    %v284 = vpop.f32.mrb[0].mxu0
    %285 = vdwg.mxu0
    %v286 = vmax.f32 %v283, 0.0
    %s287 = scalar_lea.vmem [#allocation2], 96
    %v288 = vld [vmem:[%s287] sm:$0xff]
    %v289 = vld [vmem:[%s287 + $0x8] sm:$0xff]
    %v290 = vld [vmem:[%s287 + $0x10] sm:$0xff]
    %v291 = vld [vmem:[%s287 + $0x18] sm:$0xff]
    %s292 = scalar_lea.vmem %s3, 2
    %v293 = vld [vmem:[%s292] sm:$0x1]
    %v295 = vlaneseq
    %v296 = vshrl.u32 %v295, 7
    %v297 = vsub.s32 0, %v296
    %v298 = vrot.slane %v293, %v297
    %v301 = vsel %vm212, %v286, 0
    %303 = vmatprep.subr.mxu0 0.0
    %304 = vmatpush1.msra.mxu0 %v288
    %305 = vmatprep.subr.mxu0 0.0
    %306 = vmatpush1.msra.mxu0 %v289
    %307 = vmatprep.subr.mxu0 0.0
    %308 = vmatpush1.msra.mxu0 %v290
    %309 = vmatprep.subr.mxu0 0.0
    %310 = vmatpush1.msra.mxu0 %v291
    %311 = vmatprep.subr.mxu0 0.0
    %312 = vmatpush1.msra.mxu0 0.0
    %313 = vmatprep.subr.mxu0 0.0
    %314 = vmatpush1.msra.mxu0 0.0
    %315 = vmatprep.subr.mxu0 0.0
    %316 = vmatpush1.msra.mxu0 0.0
    %317 = vmatprep.subr.mxu0 0.0
    %318 = vmatpush1.msra.mxu0 0.0
    %319 = vmatprep.subr.mxu0 0.0
    %320 = vmatpush1.msra.mxu0 0.0
    %321 = vmatprep.subr.mxu0 0.0
    %322 = vmatpush1.msra.mxu0 0.0
    %323 = vmatprep.subr.mxu0 0.0
    %324 = vmatpush1.msra.mxu0 0.0
    %325 = vmatprep.subr.mxu0 0.0
    %326 = vmatpush1.msra.mxu0 0.0
    %327 = vmatprep.subr.mxu0 0.0
    %328 = vmatpush1.msra.mxu0 0.0
    %329 = vmatprep.subr.mxu0 0.0
    %330 = vmatpush1.msra.mxu0 0.0
    %331 = vmatprep.subr.mxu0 0.0
    %332 = vmatpush1.msra.mxu0 0.0
    %333 = vmatprep.subr.mxu0 0.0
    %334 = vmatpush1.msra.mxu0 0.0
    %335 = vmatprep.subr.mxu0 0.0
    %336 = vmatpush1.msra.mxu0 0.0
    %337 = vmatprep.subr.mxu0 0.0
    %338 = vmatpush1.msra.mxu0 0.0
    %339 = vmatprep.subr.mxu0 0.0
    %340 = vmatpush1.msra.mxu0 0.0
    %341 = vmatprep.subr.mxu0 0.0
    %342 = vmatpush1.msra.mxu0 0.0
    %343 = vmatprep.subr.mxu0 0.0
    %344 = vmatpush1.msra.mxu0 0.0
    %345 = vmatprep.subr.mxu0 0.0
    %346 = vmatpush1.msra.mxu0 0.0
    %347 = vmatprep.subr.mxu0 0.0
    %348 = vmatpush1.msra.mxu0 0.0
    %349 = vmatprep.subr.mxu0 0.0
    %350 = vmatpush1.msra.mxu0 0.0
    %351 = vmatprep.subr.mxu0 0.0
    %352 = vmatpush1.msra.mxu0 0.0
    %353 = vmatprep.subr.mxu0 0.0
    %354 = vmatpush1.msra.mxu0 0.0
    %355 = vmatprep.subr.mxu0 0.0
    %356 = vmatpush1.msra.mxu0 0.0
    %357 = vmatprep.subr.mxu0 0.0
    %358 = vmatpush1.msra.mxu0 0.0
    %359 = vmatprep.subr.mxu0 0.0
    %360 = vmatpush1.msra.mxu0 0.0
    %361 = vmatprep.subr.mxu0 0.0
    %362 = vmatpush1.msra.mxu0 0.0
    %363 = vmatprep.subr.mxu0 0.0
    %364 = vmatpush1.msra.mxu0 0.0
    %365 = vmatprep.subr.mxu0 0.0
    %366 = vmatpush1.msra.mxu0 0.0
    %367 = vmatprep.mubr.f32.mxu0 0.0
    %368 = vmatmul.mubr.f32.gmra.mrb[0].mxu0 %v301
    %v369 = vpop.f32.mrb[0].mxu0
    %v370 = vadd.f32 %v298, %v369
    %v371 = vpop.f32.mrb[0].mxu0
    %372 = vdwg.mxu0
    %373 = vst.msk [vmem:[#allocation5] sm:$0xff] %vm116, %v370
    // Predicated region
    $region22: #{tpu_custom_call.1} parent=1 // pred_check
      _
    $region23: #{tpu_custom_call.1} parent=1 // pred_check_branch
      %375 = sbr.rel (0) target = $region25
    $region24: #{tpu_custom_call.1} parent=1 // pred_region
      %s377 = ssub.s32 128, 128
      %378 = vsyncadd [#allocation4], %s377
      %s380 = sshll.u32 [#allocation5], 4
      %s381 = int_to_ptr.vmem [resolvable:$true] %s380
      %383 = dma.vmem_to_hbm [thread:$0]  %s381, 128, %s4, [#allocation4]
    $region25: #{tpu_custom_call.1} parent=1 // pred_fallthru
      _
    // Predicated region
    $region26: #{tpu_custom_call.1} parent=1 // pred_check
      _
    $region27: #{tpu_custom_call.1} parent=1 // pred_check_branch
      %385 = sbr.rel (0) target = $region29
    $region28: #{tpu_custom_call.1} parent=1 // pred_region
      %386 = dma.done [#allocation4], 128
    $region29: #{tpu_custom_call.1} parent=1 // pred_fallthru
      _
    %387 = vsyncpa [#allocation3], 1
    %388 = vsyncpa [#allocation4], 1

</llo_original>
